<compile_context>
chip_gen: v5e
topology: v5e:2x2
jax: 0.10.0
libtpu: 0.0.40
codegen_flags: <defaults>
</compile_context>

<pallas_src>
import jax
import jax.numpy as jnp
from jax.experimental import pallas as pl
from jax.experimental.pallas import tpu as pltpu

# PRE_EMPHASIS_COEFF is an external constant in the original loss.py; 0.95 is
# the value conventionally used with ESR losses for audio amp modelling.
PRE_EMPHASIS_COEFF = 0.95

# ~2 MiB per input block (1-4 MiB band measured >=85% of HBM roofline).
_TARGET_BLOCK_BYTES = 2 * 1024 * 1024


def _esrdc_kernel(pred_ref, targ_ref, colsum_ref, err_ref, tt_ref,
                  d_prev_ref, t_prev_ref):
    n = pl.program_id(1)

    @pl.when(n == 0)
    def _():
        # Per-batch-tile init: resident accumulators + pre-emphasis carries.
        err_ref[...] = jnp.zeros_like(err_ref)
        tt_ref[...] = jnp.zeros_like(tt_ref)
        d_prev_ref[...] = jnp.zeros_like(d_prev_ref)
        t_prev_ref[...] = jnp.zeros_like(t_prev_ref)

    t = targ_ref[...].astype(jnp.float32)
    d = t - pred_ref[...].astype(jnp.float32)   # pe(t) - pe(p) == pe(t - p)

    # Lane-index mask built once per step, reused for both pre-emphasis passes.
    lane = jax.lax.broadcasted_iota(jnp.int32, t.shape, dimension=1)
    is_first_lane = lane == 0

    def preemphasis(x, prev_ref):
        # shifted[:, k] = x[:, k-1]; column 0 takes the previous tile's carry
        # (zeros on the first sample tile => pe[0] = x[0]).
        shifted = pltpu.roll(x, shift=1, axis=1)
        shifted = jnp.where(is_first_lane, prev_ref[...], shifted)
        return x - PRE_EMPHASIS_COEFF * shifted

    pe_d = preemphasis(d, d_prev_ref)
    pe_t = preemphasis(t, t_prev_ref)

    # Save this tile's last raw column as the carry for the next sample tile.
    tn = t.shape[1]
    d_prev_ref[...] = d[:, tn - 1:tn]
    t_prev_ref[...] = t[:, tn - 1:tn]

    # Partial sums for the ESR numerator and the shared denominator
    # (scalar broadcast over a lane-dense resident block; lane 0 read back).
    err_ref[...] += jnp.sum(pe_d * pe_d)
    tt_ref[...] += jnp.sum(pe_t * pe_t)

    # Per-batch-tile column sums of pe(t - p) for the DC term.
    colsum_ref[...] = jnp.sum(pe_d, axis=0, keepdims=True)[None]


def _choose_tiles(B, N, itemsize, target_bytes):
    """Pick (tb, tn): ~target_bytes per input block, (8,128)-friendly."""
    max_tn = max(128, target_bytes // (8 * itemsize))
    if N <= max_tn:
        tn = N                        # full sample axis fits the budget
    else:
        tn = 0
        cand = (max_tn // 128) * 128
        while cand >= 128:
            if N % cand == 0:
                tn = cand
                break
            cand -= 128
        if tn == 0:
            # TODO(synk): N has no 128-multiple divisor within budget (ragged
            # clip length); fall back to full-N blocks. Extremely long ragged
            # clips would need explicit N padding + column masking instead.
            tn = N
    tb = max(8, (target_bytes // (tn * itemsize)) // 8 * 8)
    tb = min(tb, ((B + 7) // 8) * 8)  # never pad batch beyond next multiple of 8
    return tb, tn


def esrdc_loss(pred, target, esr_weight=0.8,
               target_block_bytes=_TARGET_BLOCK_BYTES):
    """pred, target: (B, N) audio (f32 or bf16). Returns scalar f32 loss."""
    assert pred.shape == target.shape and pred.ndim == 2
    B, N = pred.shape

    tb, tn = _choose_tiles(B, N, 4, target_block_bytes)
    b_pad = ((B + tb - 1) // tb) * tb
    if b_pad != B:
        # Zero rows contribute exactly 0 to every partial sum (pe(0) == 0).
        pad = ((0, b_pad - B), (0, 0))
        pred = jnp.pad(pred, pad)
        target = jnp.pad(target, pad)
    nb, nn = b_pad // tb, N // tn

    colsum, err_p, tt_p = pl.pallas_call(
        _esrdc_kernel,
        out_shape=(
            jax.ShapeDtypeStruct((nb, 1, N), jnp.float32),    # per-tile column sums of pe(d)
            jax.ShapeDtypeStruct((nb, 1, 128), jnp.float32),  # per-tile sum pe(d)^2
            jax.ShapeDtypeStruct((nb, 1, 128), jnp.float32),  # per-tile sum pe(t)^2
        ),
        grid_spec=pltpu.PrefetchScalarGridSpec(
            num_scalar_prefetch=0,
            grid=(nb, nn),
            in_specs=[
                pl.BlockSpec((tb, tn), lambda b, n: (b, n)),
                pl.BlockSpec((tb, tn), lambda b, n: (b, n)),
            ],
            out_specs=[
                pl.BlockSpec((1, 1, tn), lambda b, n: (b, 0, n)),
                pl.BlockSpec((1, 1, 128), lambda b, n: (b, 0, 0)),
                pl.BlockSpec((1, 1, 128), lambda b, n: (b, 0, 0)),
            ],
            scratch_shapes=[
                pltpu.VMEM((tb, 1), jnp.float32),   # carry: last column of d
                pltpu.VMEM((tb, 1), jnp.float32),   # carry: last column of t
            ],
        ),
        compiler_params=pltpu.CompilerParams(
            # Batch tiles are independent (per-tile partial outputs) ->
            # "parallel" lets v7x shard them over both TensorCores; the sample
            # axis carries the pre-emphasis state -> must stay "arbitrary".
            dimension_semantics=("parallel", "arbitrary"),
        ),
    )(pred, target)

    s_err = jnp.sum(err_p[:, 0, 0])               # sum pe(t-p)^2 over all elements
    s_tt = jnp.sum(tt_p[:, 0, 0])                 # sum pe(t)^2   over all elements
    c = jnp.sum(colsum[:, 0, :], axis=0)          # c[n] = sum_b pe(t-p)[b, n]

    # ESR = mean(pe(d)^2)/mean(pe(t)^2) = s_err/s_tt
    esr = s_err / s_tt
    # DC  = mean_n((c[n]/B)^2) / (s_tt/(B*N)) = sum_n c[n]^2 / (B * s_tt)
    dc = jnp.sum(c * c) / (B * s_tt)
    return esr_weight * esr + (1.0 - esr_weight) * dc


def _esrdc_ref(pred, target, esr_weight=0.8):
    """Pure-JAX reference mirroring the PyTorch ESRDCLoss."""
    def pe(x):
        shifted = jnp.concatenate(
            [jnp.zeros_like(x[..., :1]), x[..., :-1]], axis=-1)
        return x - PRE_EMPHASIS_COEFF * shifted
    p, t = pe(pred.astype(jnp.float32)), pe(target.astype(jnp.float32))
    denom = jnp.mean(t ** 2)
    esr = jnp.mean((t - p) ** 2) / denom
    dc = jnp.mean((jnp.mean(t, axis=0) - jnp.mean(p, axis=0)) ** 2) / denom
    return esr_weight * esr + (1.0 - esr_weight) * dc


if __name__ == "__main__":
    key = jax.random.PRNGKey(0)
    k1, k2, k3, k4 = jax.random.split(key, 4)

    # Case 1: small batch of short clips (single tile, default byte budget).
    B, N = 4, 2048
    pred = jax.random.normal(k1, (B, N), dtype=jnp.float32)
    target = jax.random.normal(k2, (B, N), dtype=jnp.float32)
    loss = esrdc_loss(pred, target)
    jax.block_until_ready(loss)
    ref = _esrdc_ref(pred, target)
    assert jnp.allclose(loss, ref, rtol=1e-5, atol=1e-6), (loss, ref)

    # Case 2: force multi-tile batch + sample grid (exercises batch padding and
    # the cross-tile pre-emphasis carry) by shrinking the block byte budget.
    B2, N2 = 12, 2048
    pred2 = jax.random.normal(k3, (B2, N2), dtype=jnp.float32)
    target2 = jax.random.normal(k4, (B2, N2), dtype=jnp.float32)
    loss2 = esrdc_loss(pred2, target2, target_block_bytes=16 * 1024)
    jax.block_until_ready(loss2)
    ref2 = _esrdc_ref(pred2, target2)
    assert jnp.allclose(loss2, ref2, rtol=1e-5, atol=1e-6), (loss2, ref2)

    print("KERNEL_OK")
</pallas_src>

<mosaic_0001>
module attributes {stable_mosaic.version = 11 : i64} {
  func.func @_esrdc_kernel(%arg0: i32, %arg1: i32, %arg2: memref<8x2048xf32, #tpu.memory_space<vmem>>, %arg3: memref<8x2048xf32, #tpu.memory_space<vmem>>, %arg4: memref<1x1x2048xf32, #tpu.memory_space<vmem>>, %arg5: memref<1x1x128xf32, #tpu.memory_space<vmem>>, %arg6: memref<1x1x128xf32, #tpu.memory_space<vmem>>, %arg7: memref<8x1xf32, #tpu.memory_space<vmem>>, %arg8: memref<8x1xf32, #tpu.memory_space<vmem>>) attributes {dimension_semantics = [#tpu.dimension_semantics<parallel>, #tpu.dimension_semantics<arbitrary>], iteration_bounds = array<i64: 1, 1>, scalar_prefetch = 0 : i64, scratch_operands = 2 : i64, tpu.core_type = #tpu.core_type<tc>, window_params = [{transform_indices = @transform_0, window_bounds = array<i64: 8, 2048>}, {transform_indices = @transform_1, window_bounds = array<i64: 8, 2048>}, {transform_indices = @transform_2, window_bounds = array<i64: 1, 1, 2048>}, {transform_indices = @transform_3, window_bounds = array<i64: 1, 1, 128>}, {transform_indices = @transform_4, window_bounds = array<i64: 1, 1, 128>}]} {
    %c0_i32 = arith.constant 0 : i32
    %0 = arith.cmpi eq, %arg1, %c0_i32 : i32
    %1 = arith.extui %0 : i1 to i32
    %c0_i32_0 = arith.constant 0 : i32
    %2 = arith.cmpi ne, %1, %c0_i32_0 : i32
    scf.if %2 {
      %cst_33 = arith.constant 0.000000e+00 : f32
      %51 = vector.broadcast %cst_33 : f32 to vector<1x1x128xf32>
      %c0_34 = arith.constant 0 : index
      %c0_35 = arith.constant 0 : index
      %c0_36 = arith.constant 0 : index
      %52 = vector.load %arg5[%c0_34, %c0_35, %c0_36] : memref<1x1x128xf32, #tpu.memory_space<vmem>>, vector<1x1x128xf32>
      tpu.vector_store %arg5[%c0_34, %c0_35, %c0_36], %51 {strides = array<i32>} : memref<1x1x128xf32, #tpu.memory_space<vmem>>, vector<1x1x128xf32>,
      %cst_37 = arith.constant 0.000000e+00 : f32
      %53 = vector.broadcast %cst_37 : f32 to vector<1x1x128xf32>
      %c0_38 = arith.constant 0 : index
      %c0_39 = arith.constant 0 : index
      %c0_40 = arith.constant 0 : index
      %54 = vector.load %arg6[%c0_38, %c0_39, %c0_40] : memref<1x1x128xf32, #tpu.memory_space<vmem>>, vector<1x1x128xf32>
      tpu.vector_store %arg6[%c0_38, %c0_39, %c0_40], %53 {strides = array<i32>} : memref<1x1x128xf32, #tpu.memory_space<vmem>>, vector<1x1x128xf32>,
      %cst_41 = arith.constant 0.000000e+00 : f32
      %55 = vector.broadcast %cst_41 : f32 to vector<8x1xf32>
      %c0_42 = arith.constant 0 : index
      %c0_43 = arith.constant 0 : index
      %56 = vector.load %arg7[%c0_42, %c0_43] : memref<8x1xf32, #tpu.memory_space<vmem>>, vector<8x1xf32>
      tpu.vector_store %arg7[%c0_42, %c0_43], %55 {strides = array<i32>} : memref<8x1xf32, #tpu.memory_space<vmem>>, vector<8x1xf32>,
      %cst_44 = arith.constant 0.000000e+00 : f32
      %57 = vector.broadcast %cst_44 : f32 to vector<8x1xf32>
      %c0_45 = arith.constant 0 : index
      %c0_46 = arith.constant 0 : index
      %58 = vector.load %arg8[%c0_45, %c0_46] : memref<8x1xf32, #tpu.memory_space<vmem>>, vector<8x1xf32>
      tpu.vector_store %arg8[%c0_45, %c0_46], %57 {strides = array<i32>} : memref<8x1xf32, #tpu.memory_space<vmem>>, vector<8x1xf32>,
    } else {
    }
    %c0 = arith.constant 0 : index
    %c0_1 = arith.constant 0 : index
    %3 = vector.load %arg3[%c0, %c0_1] : memref<8x2048xf32, #tpu.memory_space<vmem>>, vector<8x2048xf32>
    %c0_2 = arith.constant 0 : index
    %c0_3 = arith.constant 0 : index
    %4 = vector.load %arg2[%c0_2, %c0_3] : memref<8x2048xf32, #tpu.memory_space<vmem>>, vector<8x2048xf32>
    %5 = arith.subf %3, %4 : vector<8x2048xf32>
    %6 = tpu.iota {dimensions = array<i32: 1>} : vector<8x2048xi32>
    %c0_i32_4 = arith.constant 0 : i32
    %7 = vector.broadcast %c0_i32_4 : i32 to vector<8x2048xi32>
    %8 = arith.cmpi eq, %6, %7 : vector<8x2048xi32>
    %c1_i32 = arith.constant 1 : i32
    %9 = tpu.dynamic_rotate %5 by %c1_i32 dim 1 : vector<8x2048xf32>, i32 -> vector<8x2048xf32>
    %c0_5 = arith.constant 0 : index
    %c0_6 = arith.constant 0 : index
    %10 = vector.load %arg7[%c0_5, %c0_6] : memref<8x1xf32, #tpu.memory_space<vmem>>, vector<8x1xf32>
    %11 = vector.shape_cast %10 : vector<8x1xf32> to vector<8x1xf32>
    %12 = vector.broadcast %11 : vector<8x1xf32> to vector<8x2048xf32>
    %13 = arith.select %8, %12, %9 : vector<8x2048xi1>, vector<8x2048xf32>
    %cst = arith.constant 0.949999988 : f32
    %14 = vector.broadcast %cst : f32 to vector<8x2048xf32>
    %15 = arith.mulf %14, %13 : vector<8x2048xf32>
    %16 = arith.subf %5, %15 : vector<8x2048xf32>
    %c1_i32_7 = arith.constant 1 : i32
    %17 = tpu.dynamic_rotate %3 by %c1_i32_7 dim 1 : vector<8x2048xf32>, i32 -> vector<8x2048xf32>
    %c0_8 = arith.constant 0 : index
    %c0_9 = arith.constant 0 : index
    %18 = vector.load %arg8[%c0_8, %c0_9] : memref<8x1xf32, #tpu.memory_space<vmem>>, vector<8x1xf32>
    %19 = vector.shape_cast %18 : vector<8x1xf32> to vector<8x1xf32>
    %20 = vector.broadcast %19 : vector<8x1xf32> to vector<8x2048xf32>
    %21 = arith.select %8, %20, %17 : vector<8x2048xi1>, vector<8x2048xf32>
    %cst_10 = arith.constant 0.949999988 : f32
    %22 = vector.broadcast %cst_10 : f32 to vector<8x2048xf32>
    %23 = arith.mulf %22, %21 : vector<8x2048xf32>
    %24 = arith.subf %3, %23 : vector<8x2048xf32>
    %25 = vector.extract_strided_slice %5 {offsets = [0, 2047], sizes = [8, 1], strides = [1, 1]} : vector<8x2048xf32> to vector<8x1xf32>
    %c0_11 = arith.constant 0 : index
    %c0_12 = arith.constant 0 : index
    %26 = vector.load %arg7[%c0_11, %c0_12] : memref<8x1xf32, #tpu.memory_space<vmem>>, vector<8x1xf32>
    tpu.vector_store %arg7[%c0_11, %c0_12], %25 {strides = array<i32>} : memref<8x1xf32, #tpu.memory_space<vmem>>, vector<8x1xf32>,
    %27 = vector.extract_strided_slice %3 {offsets = [0, 2047], sizes = [8, 1], strides = [1, 1]} : vector<8x2048xf32> to vector<8x1xf32>
    %c0_13 = arith.constant 0 : index
    %c0_14 = arith.constant 0 : index
    %28 = vector.load %arg8[%c0_13, %c0_14] : memref<8x1xf32, #tpu.memory_space<vmem>>, vector<8x1xf32>
    tpu.vector_store %arg8[%c0_13, %c0_14], %27 {strides = array<i32>} : memref<8x1xf32, #tpu.memory_space<vmem>>, vector<8x1xf32>,
    %c0_15 = arith.constant 0 : index
    %c0_16 = arith.constant 0 : index
    %c0_17 = arith.constant 0 : index
    %29 = vector.load %arg5[%c0_15, %c0_16, %c0_17] : memref<1x1x128xf32, #tpu.memory_space<vmem>>, vector<1x1x128xf32>
    %30 = arith.mulf %16, %16 : vector<8x2048xf32>
    %31 = vector.shape_cast %30 : vector<8x2048xf32> to vector<1x8x2048xf32>
    %cst_18 = arith.constant dense<0.000000e+00> : vector<1xf32>
    %32 = vector.multi_reduction <add>, %31, %cst_18 [1, 2] : vector<1x8x2048xf32> to vector<1xf32>
    %33 = vector.shape_cast %32 : vector<1xf32> to vector<1x1x1xf32>
    %34 = vector.extract %33[0, 0, 0] : f32 from vector<1x1x1xf32>
    %35 = vector.broadcast %34 : f32 to vector<1x1x128xf32>
    %36 = arith.addf %29, %35 : vector<1x1x128xf32>
    %c0_19 = arith.constant 0 : index
    %c0_20 = arith.constant 0 : index
    %c0_21 = arith.constant 0 : index
    %37 = vector.load %arg5[%c0_19, %c0_20, %c0_21] : memref<1x1x128xf32, #tpu.memory_space<vmem>>, vector<1x1x128xf32>
    tpu.vector_store %arg5[%c0_19, %c0_20, %c0_21], %36 {strides = array<i32>} : memref<1x1x128xf32, #tpu.memory_space<vmem>>, vector<1x1x128xf32>,
    %c0_22 = arith.constant 0 : index
    %c0_23 = arith.constant 0 : index
    %c0_24 = arith.constant 0 : index
    %38 = vector.load %arg6[%c0_22, %c0_23, %c0_24] : memref<1x1x128xf32, #tpu.memory_space<vmem>>, vector<1x1x128xf32>
    %39 = arith.mulf %24, %24 : vector<8x2048xf32>
    %40 = vector.shape_cast %39 : vector<8x2048xf32> to vector<1x8x2048xf32>
    %cst_25 = arith.constant dense<0.000000e+00> : vector<1xf32>
    %41 = vector.multi_reduction <add>, %40, %cst_25 [1, 2] : vector<1x8x2048xf32> to vector<1xf32>
    %42 = vector.shape_cast %41 : vector<1xf32> to vector<1x1x1xf32>
    %43 = vector.extract %42[0, 0, 0] : f32 from vector<1x1x1xf32>
    %44 = vector.broadcast %43 : f32 to vector<1x1x128xf32>
    %45 = arith.addf %38, %44 : vector<1x1x128xf32>
    %c0_26 = arith.constant 0 : index
    %c0_27 = arith.constant 0 : index
    %c0_28 = arith.constant 0 : index
    %46 = vector.load %arg6[%c0_26, %c0_27, %c0_28] : memref<1x1x128xf32, #tpu.memory_space<vmem>>, vector<1x1x128xf32>
    tpu.vector_store %arg6[%c0_26, %c0_27, %c0_28], %45 {strides = array<i32>} : memref<1x1x128xf32, #tpu.memory_space<vmem>>, vector<1x1x128xf32>,
    %cst_29 = arith.constant dense<0.000000e+00> : vector<2048xf32>
    %47 = vector.multi_reduction <add>, %16, %cst_29 [0] : vector<8x2048xf32> to vector<2048xf32>
    %48 = vector.shape_cast %47 : vector<2048xf32> to vector<1x2048xf32>
    %49 = vector.shape_cast %48 : vector<1x2048xf32> to vector<1x1x2048xf32>
    %c0_30 = arith.constant 0 : index
    %c0_31 = arith.constant 0 : index
    %c0_32 = arith.constant 0 : index
    %50 = vector.load %arg4[%c0_30, %c0_31, %c0_32] : memref<1x1x2048xf32, #tpu.memory_space<vmem>>, vector<1x1x2048xf32>
    tpu.vector_store %arg4[%c0_30, %c0_31, %c0_32], %49 {strides = array<i32>} : memref<1x1x2048xf32, #tpu.memory_space<vmem>>, vector<1x1x2048xf32>,
    return
  }
  func.func @transform_0(%arg0: i32, %arg1: i32) -> (i32, i32) {
    %c0_i32 = arith.constant 0 : i32
    return %arg0, %arg1 : i32, i32
  }
  func.func @transform_1(%arg0: i32, %arg1: i32) -> (i32, i32) {
    %c0_i32 = arith.constant 0 : i32
    return %arg0, %arg1 : i32, i32
  }
  func.func @transform_2(%arg0: i32, %arg1: i32) -> (i32, i32, i32) {
    %c0_i32 = arith.constant 0 : i32
    %c0_i32_0 = arith.constant 0 : i32
    return %arg0, %c0_i32, %arg1 : i32, i32, i32
  }
  func.func @transform_3(%arg0: i32, %arg1: i32) -> (i32, i32, i32) {
    %c0_i32 = arith.constant 0 : i32
    %c0_i32_0 = arith.constant 0 : i32
    %c0_i32_1 = arith.constant 0 : i32
    return %arg0, %c0_i32, %c0_i32_0 : i32, i32, i32
  }
  func.func @transform_4(%arg0: i32, %arg1: i32) -> (i32, i32, i32) {
    %c0_i32 = arith.constant 0 : i32
    %c0_i32_0 = arith.constant 0 : i32
    %c0_i32_1 = arith.constant 0 : i32
    return %arg0, %c0_i32, %c0_i32_0 : i32, i32, i32
  }
}

</mosaic_0001>

<llo_original>
// kernel: tpu_custom_call.1
$region0: #{tpu_custom_call.1}
  #allocation0 [shape = 'u32[]', space=smem, size = 0x4, offset = 0x4, fixed_abs, tag = 'smem constant byte address 0x4 - core index']
  #allocation1 [shape = 'u32[72,128]{1,0:T(1,128)}', space=vmem, size = 0x9000, scoped, tag = 'internal scratch']
  #allocation2 [shape = 'f32[8,1]{1,0:T(8,128)}', space=vmem, size = 0x1000, scoped, tag = 'scratch operand']
  #allocation3 [shape = 'f32[8,1]{1,0:T(8,128)}', space=vmem, size = 0x1000, scoped, tag = 'scratch operand']
  %s0 = inlined_call_operand.hbm [shape: f32[8,2048], index: 0, kind: input, shape index: {}]
  %s1 = inlined_call_operand.hbm [shape: f32[8,2048], index: 1, kind: input, shape index: {}]
  %s2 = inlined_call_operand.hbm [shape: f32[1,1,2048], index: 2, kind: output, shape index: {0}]
  %s3 = inlined_call_operand.hbm [shape: f32[1,1,128], index: 3, kind: output, shape index: {1}]
  %s4 = inlined_call_operand.hbm [shape: f32[1,1,128], index: 4, kind: output, shape index: {2}]
  %5 = xla_tuple %s2, %s3, %s4
  %s6 = sld [smem:[#allocation0]]
  $region46: #{tpu_custom_call.1} parent=0
    _
  %s8 = ssub.s32 1, %s6
  %s9 = scalar_select 0, %s8, %s6
  $region1: #{tpu_custom_call.1} parent=0
    #allocation4 [shape = 'u8[65536]{0}', space=vmem, size = 0x10000, scoped, tag = 'input window, operand 0, single buffered']
    #allocation5 [shape = 's32[1]{0}', space=sflag, size = 0x4, scoped, tag = 'scoped memory for tpu_custom_call.1']
    #allocation6 [shape = 's32[1]{0}', space=sflag, size = 0x4, scoped, tag = 'scoped memory for tpu_custom_call.1']
    #allocation7 [shape = 'u8[65536]{0}', space=vmem, size = 0x10000, scoped, tag = 'input window, operand 1, single buffered']
    #allocation8 [shape = 's32[1]{0}', space=sflag, size = 0x4, scoped, tag = 'scoped memory for tpu_custom_call.1']
    #allocation9 [shape = 'u8[8192]{0}', space=vmem, size = 0x2000, scoped, tag = 'output window, operand 0, single buffered']
    #allocation10 [shape = 'u8[512]{0}', space=vmem, size = 0x400, scoped, tag = 'output window, operand 1, single buffered']
    #allocation11 [shape = 's32[1]{0}', space=sflag, size = 0x4, scoped, tag = 'scoped memory for tpu_custom_call.1']
    #allocation12 [shape = 'u8[512]{0}', space=vmem, size = 0x400, scoped, tag = 'output window, operand 2, single buffered']
    %10 = vsyncpa [#allocation5], 0
    %11 = vsyncpa [#allocation8], 0
    %12 = vsyncpa [#allocation6], 0
    %13 = vsyncpa [#allocation11], 0
    // Predicated region
    $region2: #{tpu_custom_call.1} parent=1 // pred_check
      _
    $region3: #{tpu_custom_call.1} parent=1 // pred_check_branch
      %15 = sbr.rel (0) target = $region5
    $region4: #{tpu_custom_call.1} parent=1 // pred_region
      %17 = vsyncadd [#allocation5], 0
      %s19 = sshll.u32 %s0, 4
      %s20 = int_to_ptr.hbm [resolvable:$true] %s19
      %s21 = sshll.u32 [#allocation4], 4
      %s22 = int_to_ptr.vmem [resolvable:$true] %s21
      %24 = dma.hbm_to_vmem [thread:$0]  %s20, 2048, %s22, [#allocation5]
    $region5: #{tpu_custom_call.1} parent=1 // pred_fallthru
      _
    // Predicated region
    $region6: #{tpu_custom_call.1} parent=1 // pred_check
      _
    $region7: #{tpu_custom_call.1} parent=1 // pred_check_branch
      %26 = sbr.rel (0) target = $region9
    $region8: #{tpu_custom_call.1} parent=1 // pred_region
      %28 = vsyncadd [#allocation8], 0
      %s30 = sshll.u32 %s1, 4
      %s31 = int_to_ptr.hbm [resolvable:$true] %s30
      %s32 = sshll.u32 [#allocation7], 4
      %s33 = int_to_ptr.vmem [resolvable:$true] %s32
      %35 = dma.hbm_to_vmem [thread:$0]  %s31, 2048, %s33, [#allocation8]
    $region9: #{tpu_custom_call.1} parent=1 // pred_fallthru
      _
    // Predicated region
    $region10: #{tpu_custom_call.1} parent=1 // pred_check
      _
    $region11: #{tpu_custom_call.1} parent=1 // pred_check_branch
      %37 = sbr.rel (0) target = $region13
    $region12: #{tpu_custom_call.1} parent=1 // pred_region
      %39 = dma.done [#allocation5], 2048
    $region13: #{tpu_custom_call.1} parent=1 // pred_fallthru
      _
    // Predicated region
    $region14: #{tpu_custom_call.1} parent=1 // pred_check
      _
    $region15: #{tpu_custom_call.1} parent=1 // pred_check_branch
      %41 = sbr.rel (0) target = $region17
    $region16: #{tpu_custom_call.1} parent=1 // pred_region
      %43 = dma.done [#allocation8], 2048
    $region17: #{tpu_custom_call.1} parent=1 // pred_fallthru
      _
    %p44 = scmp.eq.s32.totalorder 0, 0
    // Predicated region
    $region18: #{tpu_custom_call.1} parent=1 // pred_check
      %p45 = pneg %p44
    $region19: #{tpu_custom_call.1} parent=1 // pred_check_branch
      %47 = sbr.rel (%p45) target = $region21
    $region20: #{tpu_custom_call.1} parent=1 // pred_region
      %48 = vst [vmem:[#allocation10] sm:$0x1] 0.0
      %49 = vst [vmem:[#allocation12] sm:$0x1] 0.0
      %vm50 = vcmask 7168
      %51 = vst.msk [vmem:[#allocation2] sm:$0xff] %vm50, 0.0
      %52 = vst.msk [vmem:[#allocation3] sm:$0xff] %vm50, 0.0
    $region21: #{tpu_custom_call.1} parent=1 // pred_fallthru
      _
    %v53 = vld [vmem:[#allocation7] sm:$0xff]
    %v54 = vld [vmem:[#allocation7 + $0x8] sm:$0xff]
    %v55 = vld [vmem:[#allocation7 + $0x10] sm:$0xff]
    %v56 = vld [vmem:[#allocation7 + $0x18] sm:$0xff]
    %v57 = vld [vmem:[#allocation7 + $0x20] sm:$0xff]
    %v58 = vld [vmem:[#allocation7 + $0x28] sm:$0xff]
    %v59 = vld [vmem:[#allocation7 + $0x30] sm:$0xff]
    %v60 = vld [vmem:[#allocation7 + $0x38] sm:$0xff]
    %v61 = vld [vmem:[#allocation7 + $0x40] sm:$0xff]
    %v62 = vld [vmem:[#allocation7 + $0x48] sm:$0xff]
    %v63 = vld [vmem:[#allocation7 + $0x50] sm:$0xff]
    %v64 = vld [vmem:[#allocation7 + $0x58] sm:$0xff]
    %v65 = vld [vmem:[#allocation7 + $0x60] sm:$0xff]
    %v66 = vld [vmem:[#allocation7 + $0x68] sm:$0xff]
    %v67 = vld [vmem:[#allocation7 + $0x70] sm:$0xff]
    %v68 = vld [vmem:[#allocation7 + $0x78] sm:$0xff]
    %v69 = vld [vmem:[#allocation4] sm:$0xff]
    %v70 = vld [vmem:[#allocation4 + $0x8] sm:$0xff]
    %v71 = vld [vmem:[#allocation4 + $0x10] sm:$0xff]
    %v72 = vld [vmem:[#allocation4 + $0x18] sm:$0xff]
    %v73 = vld [vmem:[#allocation4 + $0x20] sm:$0xff]
    %v74 = vld [vmem:[#allocation4 + $0x28] sm:$0xff]
    %v75 = vld [vmem:[#allocation4 + $0x30] sm:$0xff]
    %v76 = vld [vmem:[#allocation4 + $0x38] sm:$0xff]
    %v77 = vld [vmem:[#allocation4 + $0x40] sm:$0xff]
    %v78 = vld [vmem:[#allocation4 + $0x48] sm:$0xff]
    %v79 = vld [vmem:[#allocation4 + $0x50] sm:$0xff]
    %v80 = vld [vmem:[#allocation4 + $0x58] sm:$0xff]
    %v81 = vld [vmem:[#allocation4 + $0x60] sm:$0xff]
    %v82 = vld [vmem:[#allocation4 + $0x68] sm:$0xff]
    %v83 = vld [vmem:[#allocation4 + $0x70] sm:$0xff]
    %v84 = vld [vmem:[#allocation4 + $0x78] sm:$0xff]
    %v85 = vsub.f32 %v53, %v69
    %v86 = vsub.f32 %v54, %v70
    %v87 = vsub.f32 %v55, %v71
    %v88 = vsub.f32 %v56, %v72
    %v89 = vsub.f32 %v57, %v73
    %v90 = vsub.f32 %v58, %v74
    %v91 = vsub.f32 %v59, %v75
    %v92 = vsub.f32 %v60, %v76
    %v93 = vsub.f32 %v61, %v77
    %v94 = vsub.f32 %v62, %v78
    %v95 = vsub.f32 %v63, %v79
    %v96 = vsub.f32 %v64, %v80
    %v97 = vsub.f32 %v65, %v81
    %v98 = vsub.f32 %v66, %v82
    %v99 = vsub.f32 %v67, %v83
    %v100 = vsub.f32 %v68, %v84
    %v101 = vlaneseq
    %v102 = vand.u32 %v101, 127
    %v103 = vadd.s32 %v102, 128
    %v104 = vadd.s32 %v102, 256
    %v105 = vadd.s32 %v102, 384
    %v106 = vadd.s32 %v102, 512
    %v107 = vadd.s32 %v102, 640
    %v108 = vadd.s32 %v102, 768
    %v109 = vadd.s32 %v102, 896
    %v110 = vadd.s32 %v102, 1024
    %v111 = vadd.s32 %v102, 1152
    %v112 = vadd.s32 %v102, 1280
    %v113 = vadd.s32 %v102, 1408
    %v114 = vadd.s32 %v102, 1536
    %v115 = vadd.s32 %v102, 1664
    %v116 = vadd.s32 %v102, 1792
    %v117 = vadd.s32 %v102, 1920
    %vm118 = vcmp.eq.s32.totalorder %v102, 0
    %vm119 = vcmp.eq.s32.totalorder %v103, 0
    %vm120 = vcmp.eq.s32.totalorder %v104, 0
    %vm121 = vcmp.eq.s32.totalorder %v105, 0
    %vm122 = vcmp.eq.s32.totalorder %v106, 0
    %vm123 = vcmp.eq.s32.totalorder %v107, 0
    %vm124 = vcmp.eq.s32.totalorder %v108, 0
    %vm125 = vcmp.eq.s32.totalorder %v109, 0
    %vm126 = vcmp.eq.s32.totalorder %v110, 0
    %vm127 = vcmp.eq.s32.totalorder %v111, 0
    %vm128 = vcmp.eq.s32.totalorder %v112, 0
    %vm129 = vcmp.eq.s32.totalorder %v113, 0
    %vm130 = vcmp.eq.s32.totalorder %v114, 0
    %vm131 = vcmp.eq.s32.totalorder %v115, 0
    %vm132 = vcmp.eq.s32.totalorder %v116, 0
    %vm133 = vcmp.eq.s32.totalorder %v117, 0
    %134 = vrot.lane.b32.xlu0 %v85, 1
    %v135 = vpop.permute.xlu0 %134
    %136 = vrot.lane.b32.xlu0 %v86, 1
    %v137 = vpop.permute.xlu0 %136
    %138 = vrot.lane.b32.xlu0 %v87, 1
    %v139 = vpop.permute.xlu0 %138
    %140 = vrot.lane.b32.xlu0 %v88, 1
    %v141 = vpop.permute.xlu0 %140
    %142 = vrot.lane.b32.xlu0 %v89, 1
    %v143 = vpop.permute.xlu0 %142
    %144 = vrot.lane.b32.xlu0 %v90, 1
    %v145 = vpop.permute.xlu0 %144
    %146 = vrot.lane.b32.xlu0 %v91, 1
    %v147 = vpop.permute.xlu0 %146
    %148 = vrot.lane.b32.xlu0 %v92, 1
    %v149 = vpop.permute.xlu0 %148
    %150 = vrot.lane.b32.xlu0 %v93, 1
    %v151 = vpop.permute.xlu0 %150
    %152 = vrot.lane.b32.xlu0 %v94, 1
    %v153 = vpop.permute.xlu0 %152
    %154 = vrot.lane.b32.xlu0 %v95, 1
    %v155 = vpop.permute.xlu0 %154
    %156 = vrot.lane.b32.xlu0 %v96, 1
    %v157 = vpop.permute.xlu0 %156
    %158 = vrot.lane.b32.xlu0 %v97, 1
    %v159 = vpop.permute.xlu0 %158
    %160 = vrot.lane.b32.xlu0 %v98, 1
    %v161 = vpop.permute.xlu0 %160
    %162 = vrot.lane.b32.xlu0 %v99, 1
    %v163 = vpop.permute.xlu0 %162
    %164 = vrot.lane.b32.xlu0 %v100, 1
    %v165 = vpop.permute.xlu0 %164
    %vm166 = vcmp.lt.s32.totalorder %v102, 1
    %v167 = vsel %vm166, %v163, %v165
    %v168 = vsel %vm166, %v161, %v163
    %v169 = vsel %vm166, %v159, %v161
    %v170 = vsel %vm166, %v157, %v159
    %v171 = vsel %vm166, %v155, %v157
    %v172 = vsel %vm166, %v153, %v155
    %v173 = vsel %vm166, %v151, %v153
    %v174 = vsel %vm166, %v149, %v151
    %v175 = vsel %vm166, %v147, %v149
    %v176 = vsel %vm166, %v145, %v147
    %v177 = vsel %vm166, %v143, %v145
    %v178 = vsel %vm166, %v141, %v143
    %v179 = vsel %vm166, %v139, %v141
    %v180 = vsel %vm166, %v137, %v139
    %v181 = vsel %vm166, %v135, %v137
    %v182 = vsel %vm166, %v165, %v135
    %v183 = vld [vmem:[#allocation2] sm:$0xff]
    %185 = vset.pattern.permute.xlu0 0
    %186 = vperm.xlu0 %185, %v183
    %v187 = vpop.permute.xlu0 %186
    %v189 = vsel %vm118, %v187, %v182
    %v190 = vsel %vm119, %v187, %v181
    %v191 = vsel %vm120, %v187, %v180
    %v192 = vsel %vm121, %v187, %v179
    %v193 = vsel %vm122, %v187, %v178
    %v194 = vsel %vm123, %v187, %v177
    %v195 = vsel %vm124, %v187, %v176
    %v196 = vsel %vm125, %v187, %v175
    %v197 = vsel %vm126, %v187, %v174
    %v198 = vsel %vm127, %v187, %v173
    %v199 = vsel %vm128, %v187, %v172
    %v200 = vsel %vm129, %v187, %v171
    %v201 = vsel %vm130, %v187, %v170
    %v202 = vsel %vm131, %v187, %v169
    %v203 = vsel %vm132, %v187, %v168
    %v204 = vsel %vm133, %v187, %v167
    %v205 = vmul.f32 %v189, 0.95
    %v206 = vmul.f32 %v190, 0.95
    %v207 = vmul.f32 %v191, 0.95
    %v208 = vmul.f32 %v192, 0.95
    %v209 = vmul.f32 %v193, 0.95
    %v210 = vmul.f32 %v194, 0.95
    %v211 = vmul.f32 %v195, 0.95
    %v212 = vmul.f32 %v196, 0.95
    %v213 = vmul.f32 %v197, 0.95
    %v214 = vmul.f32 %v198, 0.95
    %v215 = vmul.f32 %v199, 0.95
    %v216 = vmul.f32 %v200, 0.95
    %v217 = vmul.f32 %v201, 0.95
    %v218 = vmul.f32 %v202, 0.95
    %v219 = vmul.f32 %v203, 0.95
    %v220 = vmul.f32 %v204, 0.95
    %v221 = vsub.f32 %v85, %v205
    %v222 = vsub.f32 %v86, %v206
    %v223 = vsub.f32 %v87, %v207
    %v224 = vsub.f32 %v88, %v208
    %v225 = vsub.f32 %v89, %v209
    %v226 = vsub.f32 %v90, %v210
    %v227 = vsub.f32 %v91, %v211
    %v228 = vsub.f32 %v92, %v212
    %v229 = vsub.f32 %v93, %v213
    %v230 = vsub.f32 %v94, %v214
    %v231 = vsub.f32 %v95, %v215
    %v232 = vsub.f32 %v96, %v216
    %v233 = vsub.f32 %v97, %v217
    %v234 = vsub.f32 %v98, %v218
    %v235 = vsub.f32 %v99, %v219
    %v236 = vsub.f32 %v100, %v220
    %237 = vrot.lane.b32.xlu0 %v53, 1
    %v238 = vpop.permute.xlu0 %237
    %239 = vrot.lane.b32.xlu0 %v54, 1
    %v240 = vpop.permute.xlu0 %239
    %241 = vrot.lane.b32.xlu0 %v55, 1
    %v242 = vpop.permute.xlu0 %241
    %243 = vrot.lane.b32.xlu0 %v56, 1
    %v244 = vpop.permute.xlu0 %243
    %245 = vrot.lane.b32.xlu0 %v57, 1
    %v246 = vpop.permute.xlu0 %245
    %247 = vrot.lane.b32.xlu0 %v58, 1
    %v248 = vpop.permute.xlu0 %247
    %249 = vrot.lane.b32.xlu0 %v59, 1
    %v250 = vpop.permute.xlu0 %249
    %251 = vrot.lane.b32.xlu0 %v60, 1
    %v252 = vpop.permute.xlu0 %251
    %253 = vrot.lane.b32.xlu0 %v61, 1
    %v254 = vpop.permute.xlu0 %253
    %255 = vrot.lane.b32.xlu0 %v62, 1
    %v256 = vpop.permute.xlu0 %255
    %257 = vrot.lane.b32.xlu0 %v63, 1
    %v258 = vpop.permute.xlu0 %257
    %259 = vrot.lane.b32.xlu0 %v64, 1
    %v260 = vpop.permute.xlu0 %259
    %261 = vrot.lane.b32.xlu0 %v65, 1
    %v262 = vpop.permute.xlu0 %261
    %263 = vrot.lane.b32.xlu0 %v66, 1
    %v264 = vpop.permute.xlu0 %263
    %265 = vrot.lane.b32.xlu0 %v67, 1
    %v266 = vpop.permute.xlu0 %265
    %267 = vrot.lane.b32.xlu0 %v68, 1
    %v268 = vpop.permute.xlu0 %267
    %v269 = vsel %vm166, %v266, %v268
    %v270 = vsel %vm166, %v264, %v266
    %v271 = vsel %vm166, %v262, %v264
    %v272 = vsel %vm166, %v260, %v262
    %v273 = vsel %vm166, %v258, %v260
    %v274 = vsel %vm166, %v256, %v258
    %v275 = vsel %vm166, %v254, %v256
    %v276 = vsel %vm166, %v252, %v254
    %v277 = vsel %vm166, %v250, %v252
    %v278 = vsel %vm166, %v248, %v250
    %v279 = vsel %vm166, %v246, %v248
    %v280 = vsel %vm166, %v244, %v246
    %v281 = vsel %vm166, %v242, %v244
    %v282 = vsel %vm166, %v240, %v242
    %v283 = vsel %vm166, %v238, %v240
    %v284 = vsel %vm166, %v268, %v238
    %v285 = vld [vmem:[#allocation3] sm:$0xff]
    %287 = vset.pattern.permute.xlu0 0
    %288 = vperm.xlu0 %287, %v285
    %v289 = vpop.permute.xlu0 %288
    %v291 = vsel %vm118, %v289, %v284
    %v292 = vsel %vm119, %v289, %v283
    %v293 = vsel %vm120, %v289, %v282
    %v294 = vsel %vm121, %v289, %v281
    %v295 = vsel %vm122, %v289, %v280
    %v296 = vsel %vm123, %v289, %v279
    %v297 = vsel %vm124, %v289, %v278
    %v298 = vsel %vm125, %v289, %v277
    %v299 = vsel %vm126, %v289, %v276
    %v300 = vsel %vm127, %v289, %v275
    %v301 = vsel %vm128, %v289, %v274
    %v302 = vsel %vm129, %v289, %v273
    %v303 = vsel %vm130, %v289, %v272
    %v304 = vsel %vm131, %v289, %v271
    %v305 = vsel %vm132, %v289, %v270
    %v306 = vsel %vm133, %v289, %v269
    %v307 = vmul.f32 %v291, 0.95
    %v308 = vmul.f32 %v292, 0.95
    %v309 = vmul.f32 %v293, 0.95
    %v310 = vmul.f32 %v294, 0.95
    %v311 = vmul.f32 %v295, 0.95
    %v312 = vmul.f32 %v296, 0.95
    %v313 = vmul.f32 %v297, 0.95
    %v314 = vmul.f32 %v298, 0.95
    %v315 = vmul.f32 %v299, 0.95
    %v316 = vmul.f32 %v300, 0.95
    %v317 = vmul.f32 %v301, 0.95
    %v318 = vmul.f32 %v302, 0.95
    %v319 = vmul.f32 %v303, 0.95
    %v320 = vmul.f32 %v304, 0.95
    %v321 = vmul.f32 %v305, 0.95
    %v322 = vmul.f32 %v306, 0.95
    %v323 = vsub.f32 %v53, %v307
    %v324 = vsub.f32 %v54, %v308
    %v325 = vsub.f32 %v55, %v309
    %v326 = vsub.f32 %v56, %v310
    %v327 = vsub.f32 %v57, %v311
    %v328 = vsub.f32 %v58, %v312
    %v329 = vsub.f32 %v59, %v313
    %v330 = vsub.f32 %v60, %v314
    %v331 = vsub.f32 %v61, %v315
    %v332 = vsub.f32 %v62, %v316
    %v333 = vsub.f32 %v63, %v317
    %v334 = vsub.f32 %v64, %v318
    %v335 = vsub.f32 %v65, %v319
    %v336 = vsub.f32 %v66, %v320
    %v337 = vsub.f32 %v67, %v321
    %v338 = vsub.f32 %v68, %v322
    %340 = vrot.lane.b32.xlu0 %v100, 1
    %v341 = vpop.permute.xlu0 %340
    %vm343 = vcmask 7168
    %344 = vst.msk [vmem:[#allocation2] sm:$0xff] %vm343, %v341
    %346 = vrot.lane.b32.xlu0 %v68, 1
    %v347 = vpop.permute.xlu0 %346
    %349 = vst.msk [vmem:[#allocation3] sm:$0xff] %vm343, %v347
    %v350 = vld [vmem:[#allocation10] sm:$0x1]
    %v351 = vmul.f32 %v221, %v221
    %v352 = vmul.f32 %v222, %v222
    %v353 = vmul.f32 %v223, %v223
    %v354 = vmul.f32 %v224, %v224
    %v355 = vmul.f32 %v225, %v225
    %v356 = vmul.f32 %v226, %v226
    %v357 = vmul.f32 %v227, %v227
    %v358 = vmul.f32 %v228, %v228
    %v359 = vmul.f32 %v229, %v229
    %v360 = vmul.f32 %v230, %v230
    %v361 = vmul.f32 %v231, %v231
    %v362 = vmul.f32 %v232, %v232
    %v363 = vmul.f32 %v233, %v233
    %v364 = vmul.f32 %v234, %v234
    %v365 = vmul.f32 %v235, %v235
    %v366 = vmul.f32 %v236, %v236
    %v367 = vadd.f32 %v351, %v352
    %v368 = vadd.f32 %v367, %v353
    %v369 = vadd.f32 %v368, %v354
    %v370 = vadd.f32 %v369, %v355
    %v371 = vadd.f32 %v370, %v356
    %v372 = vadd.f32 %v371, %v357
    %v373 = vadd.f32 %v372, %v358
    %v374 = vadd.f32 %v373, %v359
    %v375 = vadd.f32 %v374, %v360
    %v376 = vadd.f32 %v375, %v361
    %v377 = vadd.f32 %v376, %v362
    %v378 = vadd.f32 %v377, %v363
    %v379 = vadd.f32 %v378, %v364
    %v380 = vadd.f32 %v379, %v365
    %v381 = vadd.f32 %v380, %v366
    %382 = vadd.xlane.f32.xlu0 %v381
    %v383 = vpop.xlane.xlu0 %382
    %v384 = vrot.slane %v383, 4
    %v385 = vadd.f32 %v383, %v384
    %v386 = vrot.slane %v385, 2
    %v387 = vadd.f32 %v385, %v386
    %v388 = vrot.slane %v387, 1
    %v389 = vadd.f32 %v387, %v388
    %s390 = vtos %v389
    %v391 = vstv %s390
    %v392 = vadd.f32 %v350, %v391
    %393 = vst [vmem:[#allocation10] sm:$0x1] %v392
    %v394 = vld [vmem:[#allocation12] sm:$0x1]
    %v395 = vmul.f32 %v323, %v323
    %v396 = vmul.f32 %v324, %v324
    %v397 = vmul.f32 %v325, %v325
    %v398 = vmul.f32 %v326, %v326
    %v399 = vmul.f32 %v327, %v327
    %v400 = vmul.f32 %v328, %v328
    %v401 = vmul.f32 %v329, %v329
    %v402 = vmul.f32 %v330, %v330
    %v403 = vmul.f32 %v331, %v331
    %v404 = vmul.f32 %v332, %v332
    %v405 = vmul.f32 %v333, %v333
    %v406 = vmul.f32 %v334, %v334
    %v407 = vmul.f32 %v335, %v335
    %v408 = vmul.f32 %v336, %v336
    %v409 = vmul.f32 %v337, %v337
    %v410 = vmul.f32 %v338, %v338
    %v411 = vadd.f32 %v395, %v396
    %v412 = vadd.f32 %v411, %v397
    %v413 = vadd.f32 %v412, %v398
    %v414 = vadd.f32 %v413, %v399
    %v415 = vadd.f32 %v414, %v400
    %v416 = vadd.f32 %v415, %v401
    %v417 = vadd.f32 %v416, %v402
    %v418 = vadd.f32 %v417, %v403
    %v419 = vadd.f32 %v418, %v404
    %v420 = vadd.f32 %v419, %v405
    %v421 = vadd.f32 %v420, %v406
    %v422 = vadd.f32 %v421, %v407
    %v423 = vadd.f32 %v422, %v408
    %v424 = vadd.f32 %v423, %v409
    %v425 = vadd.f32 %v424, %v410
    %426 = vadd.xlane.f32.xlu0 %v425
    %v427 = vpop.xlane.xlu0 %426
    %v428 = vrot.slane %v427, 4
    %v429 = vadd.f32 %v427, %v428
    %v430 = vrot.slane %v429, 2
    %v431 = vadd.f32 %v429, %v430
    %v432 = vrot.slane %v431, 1
    %v433 = vadd.f32 %v431, %v432
    %s434 = vtos %v433
    %v435 = vstv %s434
    %v436 = vadd.f32 %v394, %v435
    %437 = vst [vmem:[#allocation12] sm:$0x1] %v436
    %v438 = vrot.slane %v221, 4
    %v439 = vadd.f32 %v221, %v438
    %v440 = vrot.slane %v439, 2
    %v441 = vadd.f32 %v439, %v440
    %v442 = vrot.slane %v441, 1
    %v443 = vadd.f32 %v441, %v442
    %v444 = vrot.slane %v222, 4
    %v445 = vadd.f32 %v222, %v444
    %v446 = vrot.slane %v445, 2
    %v447 = vadd.f32 %v445, %v446
    %v448 = vrot.slane %v447, 1
    %v449 = vadd.f32 %v447, %v448
    %v450 = vrot.slane %v223, 4
    %v451 = vadd.f32 %v223, %v450
    %v452 = vrot.slane %v451, 2
    %v453 = vadd.f32 %v451, %v452
    %v454 = vrot.slane %v453, 1
    %v455 = vadd.f32 %v453, %v454
    %v456 = vrot.slane %v224, 4
    %v457 = vadd.f32 %v224, %v456
    %v458 = vrot.slane %v457, 2
    %v459 = vadd.f32 %v457, %v458
    %v460 = vrot.slane %v459, 1
    %v461 = vadd.f32 %v459, %v460
    %v462 = vrot.slane %v225, 4
    %v463 = vadd.f32 %v225, %v462
    %v464 = vrot.slane %v463, 2
    %v465 = vadd.f32 %v463, %v464
    %v466 = vrot.slane %v465, 1
    %v467 = vadd.f32 %v465, %v466
    %v468 = vrot.slane %v226, 4
    %v469 = vadd.f32 %v226, %v468
    %v470 = vrot.slane %v469, 2
    %v471 = vadd.f32 %v469, %v470
    %v472 = vrot.slane %v471, 1
    %v473 = vadd.f32 %v471, %v472
    %v474 = vrot.slane %v227, 4
    %v475 = vadd.f32 %v227, %v474
    %v476 = vrot.slane %v475, 2
    %v477 = vadd.f32 %v475, %v476
    %v478 = vrot.slane %v477, 1
    %v479 = vadd.f32 %v477, %v478
    %v480 = vrot.slane %v228, 4
    %v481 = vadd.f32 %v228, %v480
    %v482 = vrot.slane %v481, 2
    %v483 = vadd.f32 %v481, %v482
    %v484 = vrot.slane %v483, 1
    %v485 = vadd.f32 %v483, %v484
    %v486 = vrot.slane %v229, 4
    %v487 = vadd.f32 %v229, %v486
    %v488 = vrot.slane %v487, 2
    %v489 = vadd.f32 %v487, %v488
    %v490 = vrot.slane %v489, 1
    %v491 = vadd.f32 %v489, %v490
    %v492 = vrot.slane %v230, 4
    %v493 = vadd.f32 %v230, %v492
    %v494 = vrot.slane %v493, 2
    %v495 = vadd.f32 %v493, %v494
    %v496 = vrot.slane %v495, 1
    %v497 = vadd.f32 %v495, %v496
    %v498 = vrot.slane %v231, 4
    %v499 = vadd.f32 %v231, %v498
    %v500 = vrot.slane %v499, 2
    %v501 = vadd.f32 %v499, %v500
    %v502 = vrot.slane %v501, 1
    %v503 = vadd.f32 %v501, %v502
    %v504 = vrot.slane %v232, 4
    %v505 = vadd.f32 %v232, %v504
    %v506 = vrot.slane %v505, 2
    %v507 = vadd.f32 %v505, %v506
    %v508 = vrot.slane %v507, 1
    %v509 = vadd.f32 %v507, %v508
    %v510 = vrot.slane %v233, 4
    %v511 = vadd.f32 %v233, %v510
    %v512 = vrot.slane %v511, 2
    %v513 = vadd.f32 %v511, %v512
    %v514 = vrot.slane %v513, 1
    %v515 = vadd.f32 %v513, %v514
    %v516 = vrot.slane %v234, 4
    %v517 = vadd.f32 %v234, %v516
    %v518 = vrot.slane %v517, 2
    %v519 = vadd.f32 %v517, %v518
    %v520 = vrot.slane %v519, 1
    %v521 = vadd.f32 %v519, %v520
    %v522 = vrot.slane %v235, 4
    %v523 = vadd.f32 %v235, %v522
    %v524 = vrot.slane %v523, 2
    %v525 = vadd.f32 %v523, %v524
    %v526 = vrot.slane %v525, 1
    %v527 = vadd.f32 %v525, %v526
    %v528 = vrot.slane %v236, 4
    %v529 = vadd.f32 %v236, %v528
    %v530 = vrot.slane %v529, 2
    %v531 = vadd.f32 %v529, %v530
    %v532 = vrot.slane %v531, 1
    %v533 = vadd.f32 %v531, %v532
    %v550 = vrot.slane %v449, 7
    %v551 = vrot.slane %v455, 6
    %v552 = vrot.slane %v461, 5
    %v553 = vrot.slane %v467, 4
    %v554 = vrot.slane %v473, 3
    %v555 = vrot.slane %v479, 2
    %v556 = vrot.slane %v485, 1
    %v557 = vrot.slane %v497, 7
    %v558 = vrot.slane %v503, 6
    %v559 = vrot.slane %v509, 5
    %v560 = vrot.slane %v515, 4
    %v561 = vrot.slane %v521, 3
    %v562 = vrot.slane %v527, 2
    %v563 = vrot.slane %v533, 1
    %vm564 = vcmask 1040384
    %v565 = vsel %vm564, %v443, %v550
    %vm566 = vcmask 1042434
    %v567 = vsel %vm566, %v551, %v552
    %vm568 = vcmask 1041408
    %v569 = vsel %vm568, %v565, %v567
    %vm570 = vcmask 1044484
    %v571 = vsel %vm570, %v553, %v554
    %vm572 = vcmask 1046534
    %v573 = vsel %vm572, %v555, %v556
    %vm574 = vcmask 1045508
    %v575 = vsel %vm574, %v571, %v573
    %vm576 = vcmask 1043456
    %v577 = vsel %vm576, %v569, %v575
    %v578 = vsel %vm564, %v491, %v557
    %v579 = vsel %vm566, %v558, %v559
    %v580 = vsel %vm568, %v578, %v579
    %v581 = vsel %vm570, %v560, %v561
    %v582 = vsel %vm572, %v562, %v563
    %v583 = vsel %vm574, %v581, %v582
    %v584 = vsel %vm576, %v580, %v583
    %587 = vst [vmem:[#allocation9] sm:$0xff] %v577
    %588 = vst [vmem:[#allocation9 + $0x8] sm:$0xff] %v584
    // Predicated region
    $region22: #{tpu_custom_call.1} parent=1 // pred_check
      _
    $region23: #{tpu_custom_call.1} parent=1 // pred_check_branch
      %590 = sbr.rel (0) target = $region25
    $region24: #{tpu_custom_call.1} parent=1 // pred_region
      %592 = vsyncadd [#allocation6], 0
      %s594 = sshll.u32 [#allocation9], 4
      %s595 = int_to_ptr.vmem [resolvable:$true] %s594
      %s596 = sshll.u32 %s2, 4
      %s597 = int_to_ptr.hbm [resolvable:$true] %s596
      %599 = dma.vmem_to_hbm [thread:$0]  %s595, 256, %s597, [#allocation6]
    $region25: #{tpu_custom_call.1} parent=1 // pred_fallthru
      _
    // Predicated region
    $region26: #{tpu_custom_call.1} parent=1 // pred_check
      _
    $region27: #{tpu_custom_call.1} parent=1 // pred_check_branch
      %601 = sbr.rel (0) target = $region29
    $region28: #{tpu_custom_call.1} parent=1 // pred_region
      %603 = vsyncadd [#allocation11], 0
      %s605 = sshll.u32 [#allocation10], 4
      %s606 = int_to_ptr.vmem [resolvable:$true] %s605
      %s607 = sshll.u32 %s3, 4
      %s608 = int_to_ptr.hbm [resolvable:$true] %s607
      %610 = dma.vmem_to_hbm [thread:$0]  %s606, 16, %s608, [#allocation11]
    $region29: #{tpu_custom_call.1} parent=1 // pred_fallthru
      _
    // Predicated region
    $region30: #{tpu_custom_call.1} parent=1 // pred_check
      _
    $region31: #{tpu_custom_call.1} parent=1 // pred_check_branch
      %612 = sbr.rel (0) target = $region33
    $region32: #{tpu_custom_call.1} parent=1 // pred_region
      %614 = vsyncadd [#allocation11], 0
      %s616 = sshll.u32 [#allocation12], 4
      %s617 = int_to_ptr.vmem [resolvable:$true] %s616
      %s618 = sshll.u32 %s4, 4
      %s619 = int_to_ptr.hbm [resolvable:$true] %s618
      %621 = dma.vmem_to_hbm [thread:$0]  %s617, 16, %s619, [#allocation11]
    $region33: #{tpu_custom_call.1} parent=1 // pred_fallthru
      _
    // Predicated region
    $region34: #{tpu_custom_call.1} parent=1 // pred_check
      _
    $region35: #{tpu_custom_call.1} parent=1 // pred_check_branch
      %623 = sbr.rel (0) target = $region37
    $region36: #{tpu_custom_call.1} parent=1 // pred_region
      %625 = dma.done [#allocation6], 256
    $region37: #{tpu_custom_call.1} parent=1 // pred_fallthru
      _
    // Predicated region
    $region38: #{tpu_custom_call.1} parent=1 // pred_check
      _
    $region39: #{tpu_custom_call.1} parent=1 // pred_check_branch
      %627 = sbr.rel (0) target = $region41
    $region40: #{tpu_custom_call.1} parent=1 // pred_region
      %629 = dma.done [#allocation11], 16
    $region41: #{tpu_custom_call.1} parent=1 // pred_fallthru
      _
    // Predicated region
    $region42: #{tpu_custom_call.1} parent=1 // pred_check
      _
    $region43: #{tpu_custom_call.1} parent=1 // pred_check_branch
      %631 = sbr.rel (0) target = $region45
    $region44: #{tpu_custom_call.1} parent=1 // pred_region
      %633 = dma.done [#allocation11], 16
    $region45: #{tpu_custom_call.1} parent=1 // pred_fallthru
      _
    %634 = vsyncpa [#allocation5], 1
    %635 = vsyncpa [#allocation8], 1
    %636 = vsyncpa [#allocation6], 1
    %637 = vsyncpa [#allocation11], 1

</llo_original>
